<compile_context>
chip_gen: v7x
topology: tpu7x:2x2x1
jax: 0.10.0
libtpu: 0.0.40
codegen_flags: <defaults>
</compile_context>

<pallas_src>
import jax
import jax.numpy as jnp
from jax.experimental import pallas as pl
from jax.experimental.pallas import tpu as pltpu


_VMEM_BUDGET = 40 * 1024 * 1024  # conservative: fits every TPU generation


def _round_up(v, m):
    return ((v + m - 1) // m) * m


def _pick_dim_tile(dim, cap):
    """Largest multiple-of-128 tile <= cap that divides `dim`, else `cap`."""
    if dim <= cap:
        return dim
    for t in range(cap, 127, -128):
        if dim % t == 0:
            return t
    return cap


def _pick_tiles(m, k, n, dsize):
    """Choose (tm, tk, tn) under the VMEM budget. m, k, n are padded dims."""
    tn = _pick_dim_tile(n, 512)
    tk = _pick_dim_tile(k, 1024)

    def footprint(tm):
        # double-buffered x / w / bias / out tiles + f32 accumulator scratch
        return ((2 * tm * tk + 2 * tk * tn + 2 * tn + 2 * tm * tn) * dsize
                + tm * tn * 4)

    tm = 8
    for cand in (2048, 1024, 512, 256, 128, 64, 32, 16, 8):
        cand = min(cand, m)
        if footprint(cand) <= _VMEM_BUDGET:
            tm = cand
            break

    # Megacore: v7x has 2 TensorCores per chip.  If the whole row axis would
    # be a single grid step, split it so the "parallel" axis can shard.
    if pl.cdiv(m, tm) < 2 and m >= 16:
        tm = _round_up(pl.cdiv(m, 2), 8)

    return tm, tk, tn, footprint(tm)


def _matmul_bias_kernel(x_ref, w_ref, b_ref, o_ref, acc_ref):
    """K-tiled matmul: f32 accumulator, bias + cast only in the epilogue."""
    k = pl.program_id(2)

    @pl.when(k == 0)
    def _init():
        acc_ref[...] = jnp.zeros_like(acc_ref)

    acc_ref[...] += jnp.dot(x_ref[...], w_ref[...],
                            preferred_element_type=jnp.float32)

    @pl.when(k == pl.num_programs(2) - 1)
    def _epilogue():
        o_ref[...] = (acc_ref[...] + b_ref[...].astype(jnp.float32)
                      ).astype(o_ref.dtype)


def _matmul_bias_single_k_kernel(x_ref, w_ref, b_ref, o_ref):
    """Single K block: no accumulator round-trip through VMEM scratch."""
    acc = jnp.dot(x_ref[...], w_ref[...], preferred_element_type=jnp.float32)
    o_ref[...] = (acc + b_ref[...].astype(jnp.float32)).astype(o_ref.dtype)


def linear_projection(x, w, b):
    """Shared per-frame linear projection.

    x: (B, T, D_in), w: (D_in, D_out), b: (D_out,) -> (B, T, D_out)
    Equivalent to applying the same nn.Linear to x[:, t, :] for every t.
    """
    B, T, D_in = x.shape
    D_out = w.shape[-1]
    M = B * T

    out_dtype = x.dtype
    dsize = max(x.dtype.itemsize, w.dtype.itemsize)

    # ---- Pad to TPU-friendly shapes (lane-dense output, 8-row sublanes). ---
    M_p = _round_up(M, 8)
    K_p = _round_up(D_in, 128)
    N_p = _round_up(D_out, 128)

    x2 = x.reshape(M, D_in)
    if (M_p, K_p) != (M, D_in):
        x2 = jnp.pad(x2, ((0, M_p - M), (0, K_p - D_in)))
    w2 = w
    if (K_p, N_p) != (D_in, D_out):
        w2 = jnp.pad(w, ((0, K_p - D_in), (0, N_p - D_out)))
    b2 = b
    if N_p != D_out:
        b2 = jnp.pad(b, (0, N_p - D_out))
    b2 = b2.reshape(1, N_p)

    # ---- Tile selection under a per-generation-safe VMEM budget. ----------
    tm, tk, tn, fp_bytes = _pick_tiles(M_p, K_p, N_p, dsize)
    nm = pl.cdiv(M_p, tm)
    nn = pl.cdiv(N_p, tn)
    nk = pl.cdiv(K_p, tk)

    vmem_limit = int(min(max(int(fp_bytes * 1.25) + (2 << 20), 16 << 20),
                         50 << 20))

    flops = 2 * M_p * K_p * N_p
    bytes_accessed = (M_p * K_p + K_p * N_p + N_p + M_p * N_p) * dsize
    cost = pl.CostEstimate(flops=flops, transcendentals=0,
                           bytes_accessed=bytes_accessed)

    if nk == 1:
        out_p = pl.pallas_call(
            _matmul_bias_single_k_kernel,
            out_shape=jax.ShapeDtypeStruct((M_p, N_p), out_dtype),
            grid_spec=pltpu.PrefetchScalarGridSpec(
                num_scalar_prefetch=0,
                grid=(nm, nn),
                in_specs=[
                    pl.BlockSpec((tm, K_p), lambda i, j: (i, 0)),
                    pl.BlockSpec((K_p, tn), lambda i, j: (0, j)),
                    pl.BlockSpec((1, tn), lambda i, j: (0, j)),
                ],
                out_specs=pl.BlockSpec((tm, tn), lambda i, j: (i, j)),
            ),
            compiler_params=pltpu.CompilerParams(
                dimension_semantics=("parallel", "parallel"),
                vmem_limit_bytes=vmem_limit,
            ),
            cost_estimate=cost,
        )(x2, w2, b2)
    else:
        out_p = pl.pallas_call(
            _matmul_bias_kernel,
            out_shape=jax.ShapeDtypeStruct((M_p, N_p), out_dtype),
            grid_spec=pltpu.PrefetchScalarGridSpec(
                num_scalar_prefetch=0,
                grid=(nm, nn, nk),
                in_specs=[
                    pl.BlockSpec((tm, tk), lambda i, j, k: (i, k)),
                    pl.BlockSpec((tk, tn), lambda i, j, k: (k, j)),
                    pl.BlockSpec((1, tn), lambda i, j, k: (0, j)),
                ],
                out_specs=pl.BlockSpec((tm, tn), lambda i, j, k: (i, j)),
                scratch_shapes=[pltpu.VMEM((tm, tn), jnp.float32)],
            ),
            compiler_params=pltpu.CompilerParams(
                dimension_semantics=("parallel", "parallel", "arbitrary"),
                vmem_limit_bytes=vmem_limit,
            ),
            cost_estimate=cost,
        )(x2, w2, b2)

    return out_p[:M, :D_out].reshape(B, T, D_out)


if __name__ == "__main__":
    B, T, D_in, D_out = 2, 8, 32, 32

    key = jax.random.PRNGKey(0)
    kx, kw, kb = jax.random.split(key, 3)

    x = jax.random.normal(kx, (B, T, D_in), dtype=jnp.float32)

    # nn.Linear-style init (uniform +-1/sqrt(D_in)); the reference module
    # reuses the same layer instance for every timestep, so a single (W, b).
    bound = 1.0 / (D_in ** 0.5)
    w = jax.random.uniform(kw, (D_in, D_out), minval=-bound, maxval=bound,
                           dtype=jnp.float32)
    b = jax.random.uniform(kb, (D_out,), minval=-bound, maxval=bound,
                           dtype=jnp.float32)

    out = jax.jit(linear_projection)(x, w, b)
    out = jax.block_until_ready(out)

    # Pure-JAX reference: same shared linear applied per frame.
    ref = jnp.einsum("btd,de->bte", x, w) + b[None, None, :]
    assert out.shape == (B, T, D_out)
    assert jnp.allclose(out, ref, atol=1e-5, rtol=1e-5)

    print("KERNEL_OK")
</pallas_src>

<mosaic_0001>
module attributes {stable_mosaic.version = 11 : i64} {
  func.func @_matmul_bias_single_k_kernel(%arg0: i32, %arg1: i32, %arg2: memref<8x128xf32, #tpu.memory_space<vmem>>, %arg3: memref<128x128xf32, #tpu.memory_space<vmem>>, %arg4: memref<1x128xf32, #tpu.memory_space<vmem>>, %arg5: memref<8x128xf32, #tpu.memory_space<vmem>>) attributes {dimension_semantics = [#tpu.dimension_semantics<parallel>, #tpu.dimension_semantics<parallel>], iteration_bounds = array<i64: 2, 1>, scalar_prefetch = 0 : i64, scratch_operands = 0 : i64, tpu.core_type = #tpu.core_type<tc>, window_params = [{transform_indices = @transform_0, window_bounds = array<i64: 8, 128>}, {transform_indices = @transform_1, window_bounds = array<i64: 128, 128>}, {transform_indices = @transform_2, window_bounds = array<i64: 1, 128>}, {transform_indices = @transform_3, window_bounds = array<i64: 8, 128>}]} {
    %c0 = arith.constant 0 : index
    %c0_0 = arith.constant 0 : index
    %0 = vector.load %arg2[%c0, %c0_0] : memref<8x128xf32, #tpu.memory_space<vmem>>, vector<8x128xf32>
    %c0_1 = arith.constant 0 : index
    %c0_2 = arith.constant 0 : index
    %1 = vector.load %arg3[%c0_1, %c0_2] : memref<128x128xf32, #tpu.memory_space<vmem>>, vector<128x128xf32>
    %cst = arith.constant dense<0.000000e+00> : vector<8x128xf32>
    %2 = tpu.matmul %0, %1, %cst {dimension_numbers = #tpu.dot_dimension_numbers<[1], [0], [0], [1], [0, 0, 1, 1], [], []>} : vector<8x128xf32>, vector<128x128xf32>, vector<8x128xf32> -> vector<8x128xf32>
    %c0_3 = arith.constant 0 : index
    %c0_4 = arith.constant 0 : index
    %3 = vector.load %arg4[%c0_3, %c0_4] : memref<1x128xf32, #tpu.memory_space<vmem>>, vector<1x128xf32>
    %4 = vector.broadcast %3 : vector<1x128xf32> to vector<8x128xf32>
    %5 = arith.addf %2, %4 : vector<8x128xf32>
    %c0_5 = arith.constant 0 : index
    %c0_6 = arith.constant 0 : index
    %6 = vector.load %arg5[%c0_5, %c0_6] : memref<8x128xf32, #tpu.memory_space<vmem>>, vector<8x128xf32>
    tpu.vector_store %arg5[%c0_5, %c0_6], %5 {strides = array<i32>} : memref<8x128xf32, #tpu.memory_space<vmem>>, vector<8x128xf32>,
    return
  }
  func.func @transform_0(%arg0: i32, %arg1: i32) -> (i32, i32) {
    %c0_i32 = arith.constant 0 : i32
    %c0_i32_0 = arith.constant 0 : i32
    return %arg0, %c0_i32 : i32, i32
  }
  func.func @transform_1(%arg0: i32, %arg1: i32) -> (i32, i32) {
    %c0_i32 = arith.constant 0 : i32
    %c0_i32_0 = arith.constant 0 : i32
    return %c0_i32, %arg1 : i32, i32
  }
  func.func @transform_2(%arg0: i32, %arg1: i32) -> (i32, i32) {
    %c0_i32 = arith.constant 0 : i32
    %c0_i32_0 = arith.constant 0 : i32
    return %c0_i32, %arg1 : i32, i32
  }
  func.func @transform_3(%arg0: i32, %arg1: i32) -> (i32, i32) {
    %c0_i32 = arith.constant 0 : i32
    return %arg0, %arg1 : i32, i32
  }
}

</mosaic_0001>

<llo_original>
// kernel: linear_projection.1
$region0: #{linear_projection.1}
  #allocation0 [shape = 'u32[]', space=smem, size = 0x4, offset = 0x4, fixed_abs, tag = 'smem constant byte address 0x4 - core index']
  #allocation1 [shape = 'u32[144,128]{1,0:T(1,128)}', space=vmem, size = 0x12000, scoped, tag = 'internal scratch']
  %s0 = inlined_call_operand.vmem [shape: f32[16,128], index: 0, kind: input, shape index: {}]
  %s1 = inlined_call_operand.vmem [shape: f32[128,128], index: 1, kind: input, shape index: {}]
  %s2 = inlined_call_operand.vmem [shape: f32[1,128], index: 2, kind: input, shape index: {}]
  %s3 = inlined_call_operand.vmem [shape: f32[16,128], index: 3, kind: output, shape index: {}]
  %s4 = sld [smem:[#allocation0]]
  $region45: #{linear_projection.1} parent=0
    _
  %s6 = ssub.s32 1, %s4
  %s7 = scalar_select 0, %s6, %s4
  loop: start=0, step=1, limit=4
  $region2: #{linear_projection.1} parent=0 // loop_pre_header
    _
  $region3: #{linear_projection.1} parent=0 // loop_header
    %s9 = sphi 0, %s13
    %p10 = scmp.ge.s32.totalorder %s9, 4
    %s16 = sphi 0, %s28
    %s17 = sphi 0, %s24
    %s18 = sphi 0, %s16
    %s19 = sphi 0, %s17
    %s20 = sphi 0, %s18
    %s21 = sphi 0, %s19
    %s31 = sphi 0, %s33
    %s34 = sphi 0, %s31
    %s35 = sphi 0, %s34
    %s51 = sphi 0, %s35
    %s57 = sphi 0, %s59
    %s60 = sphi 0, %s57
    %s61 = sphi 0, %s60
    %s77 = sphi 0, %s61
    %s83 = sphi 0, %s85
    %s86 = sphi 0, %s83
    %s87 = sphi 0, %s86
    %s103 = sphi 0, %s87
    %s111 = sphi 0, %s113
    %s114 = sphi 0, %s111
    %s115 = sphi 0, %s114
    %s131 = sphi 0, %s115
  $region4: #{linear_projection.1} parent=0 // loop_header_branch
    %12 = sbr.rel (%p10) target = $region8
  $region5: #{linear_projection.1} parent=0 // loop_body
    %s14 = ssub.s32 %s9, 1
    %s15 = ssub.s32 %s9, 2
    %s22 = sadd.s32 1, %s17
    %p23 = scmp.ge.s32.totalorder %s22, 1
    %s24 = scalar_select %p23, 0, %s22
    %s25 = sadd.s32 1, %s16
    %s26 = scalar_select %p23, %s25, %s16
    %p27 = scmp.ge.s32.totalorder %s26, 2
    %s28 = scalar_select %p27, 0, %s26
    %s29 = ssub.s32 %s16, %s28
    %p30 = scmp.eq.s32.totalorder %s29, 0
    %s32 = sadd.s32 %s31, 1
    %s33 = scalar_select %p30, %s31, %s32
    %p36 = pneg %p30
    %p37 = scmp.eq.s32.totalorder %s9, 1
    %p38 = por %p36, %p37
    %p39 = scmp.ne.s32.totalorder %s31, %s34
    %p40 = scmp.eq.s32.totalorder %s9, 0
    %p41 = por %p39, %p40
    %p42 = scmp.ne.s32.totalorder %s31, %s34
    %p43 = scmp.eq.s32.totalorder %s14, 1
    %p44 = por %p42, %p43
    %p45 = scmp.ne.s32.totalorder %s34, %s35
    %p46 = scmp.eq.s32.totalorder %s14, 0
    %p47 = por %p45, %p46
    %p48 = scmp.ne.s32.totalorder %s34, %s35
    %p49 = scmp.eq.s32.totalorder %s15, 1
    %p50 = por %p48, %p49
    %p52 = scmp.ne.s32.totalorder %s35, %s51
    %p53 = scmp.eq.s32.totalorder %s15, 0
    %p54 = por %p52, %p53
    %s55 = ssub.s32 %s17, %s24
    %p56 = scmp.eq.s32.totalorder %s55, 0
    %s58 = sadd.s32 %s57, 1
    %s59 = scalar_select %p56, %s57, %s58
    %p62 = pneg %p56
    %p63 = scmp.eq.s32.totalorder %s9, 1
    %p64 = por %p62, %p63
    %p65 = scmp.ne.s32.totalorder %s57, %s60
    %p66 = scmp.eq.s32.totalorder %s9, 0
    %p67 = por %p65, %p66
    %p68 = scmp.ne.s32.totalorder %s57, %s60
    %p69 = scmp.eq.s32.totalorder %s14, 1
    %p70 = por %p68, %p69
    %p71 = scmp.ne.s32.totalorder %s60, %s61
    %p72 = scmp.eq.s32.totalorder %s14, 0
    %p73 = por %p71, %p72
    %p74 = scmp.ne.s32.totalorder %s60, %s61
    %p75 = scmp.eq.s32.totalorder %s15, 1
    %p76 = por %p74, %p75
    %p78 = scmp.ne.s32.totalorder %s61, %s77
    %p79 = scmp.eq.s32.totalorder %s15, 0
    %p80 = por %p78, %p79
    %s81 = ssub.s32 %s17, %s24
    %p82 = scmp.eq.s32.totalorder %s81, 0
    %s84 = sadd.s32 %s83, 1
    %s85 = scalar_select %p82, %s83, %s84
    %p88 = pneg %p82
    %p89 = scmp.eq.s32.totalorder %s9, 1
    %p90 = por %p88, %p89
    %p91 = scmp.ne.s32.totalorder %s83, %s86
    %p92 = scmp.eq.s32.totalorder %s9, 0
    %p93 = por %p91, %p92
    %p94 = scmp.ne.s32.totalorder %s83, %s86
    %p95 = scmp.eq.s32.totalorder %s14, 1
    %p96 = por %p94, %p95
    %p97 = scmp.ne.s32.totalorder %s86, %s87
    %p98 = scmp.eq.s32.totalorder %s14, 0
    %p99 = por %p97, %p98
    %p100 = scmp.ne.s32.totalorder %s86, %s87
    %p101 = scmp.eq.s32.totalorder %s15, 1
    %p102 = por %p100, %p101
    %p104 = scmp.ne.s32.totalorder %s87, %s103
    %p105 = scmp.eq.s32.totalorder %s15, 0
    %p106 = por %p104, %p105
    %s107 = ssub.s32 %s16, %s28
    %s108 = ssub.s32 %s17, %s24
    %s109 = sor.u32 %s107, %s108
    %p110 = scmp.eq.s32.totalorder %s109, 0
    %s112 = sadd.s32 %s111, 1
    %s113 = scalar_select %p110, %s111, %s112
    %p116 = pneg %p110
    %p117 = scmp.eq.s32.totalorder %s9, 1
    %p118 = por %p116, %p117
    %p119 = scmp.ne.s32.totalorder %s111, %s114
    %p120 = scmp.eq.s32.totalorder %s9, 0
    %p121 = por %p119, %p120
    %p122 = scmp.ne.s32.totalorder %s111, %s114
    %p123 = scmp.eq.s32.totalorder %s14, 1
    %p124 = por %p122, %p123
    %p125 = scmp.ne.s32.totalorder %s114, %s115
    %p126 = scmp.eq.s32.totalorder %s14, 0
    %p127 = por %p125, %p126
    %p128 = scmp.ne.s32.totalorder %s114, %s115
    %p129 = scmp.eq.s32.totalorder %s15, 1
    %p130 = por %p128, %p129
    %p132 = scmp.ne.s32.totalorder %s115, %s131
    %p133 = scmp.eq.s32.totalorder %s15, 0
    %p134 = por %p132, %p133
    %p135 = scmp.le.s32.totalorder 1, %s9
    %p136 = scmp.lt.s32.totalorder %s9, 3
    %p137 = pnand %p135, %p136
    %p138 = pneg %p137
    // Predicated region
    $region9: #{linear_projection.1} parent=5 // pred_check
      _
    $region10: #{linear_projection.1} parent=5 // pred_check_branch
      %140 = sbr.rel (%p137) target = $region12
    $region11: #{linear_projection.1} parent=5 // pred_region
      %s141 = ssub.s32 %s9, 1
      // Predicated region
      $region13: #{linear_projection.1} parent=11 // pred_check
        %p142 = pneg %p73
      $region14: #{linear_projection.1} parent=11 // pred_check_branch
        %144 = sbr.rel (%p142) target = $region16
      $region15: #{linear_projection.1} parent=11 // pred_region
        %p145 = scmp.lt.s32.totalorder %s19, 0
        %s146 = scalar_select %p145, %s19, 0
        %s147 = smul.addr %s146, 8
        %s148 = scalar_lea.vmem %s1, %s147
      $region16: #{linear_projection.1} parent=11 // pred_fallthru
        _
      // Predicated region
      $region17: #{linear_projection.1} parent=11 // pred_check
        %p149 = pneg %p99
      $region18: #{linear_projection.1} parent=11 // pred_check_branch
        %151 = sbr.rel (%p149) target = $region20
      $region19: #{linear_projection.1} parent=11 // pred_region
        %p152 = scmp.lt.s32.totalorder %s19, 0
        %s153 = scalar_select %p152, %s19, 0
        %s154 = scalar_lea.vmem %s2, %s153
      $region20: #{linear_projection.1} parent=11 // pred_fallthru
        _
    $region12: #{linear_projection.1} parent=5 // pred_fallthru
      _
    %p155 = scmp.lt.s32.totalorder %s9, 2
    // Predicated region
    $region21: #{linear_projection.1} parent=5 // pred_check
      %p156 = pneg %p155
    $region22: #{linear_projection.1} parent=5 // pred_check_branch
      %158 = sbr.rel (%p156) target = $region24
    $region23: #{linear_projection.1} parent=5 // pred_region
      // Predicated region
      $region25: #{linear_projection.1} parent=23 // pred_check
        %p159 = pneg %p41
      $region26: #{linear_projection.1} parent=23 // pred_check_branch
        %161 = sbr.rel (%p159) target = $region28
      $region27: #{linear_projection.1} parent=23 // pred_region
        %p162 = scmp.lt.s32.totalorder %s16, 1
        %s163 = scalar_select %p162, %s16, 1
        %s164 = smul.addr %s163, 8
        %s165 = scalar_lea.vmem %s0, %s164
      $region28: #{linear_projection.1} parent=23 // pred_fallthru
        _
    $region24: #{linear_projection.1} parent=5 // pred_fallthru
      _
    %p166 = scmp.le.s32.totalorder 1, %s9
    %p167 = scmp.lt.s32.totalorder %s9, 3
    %p168 = pnand %p166, %p167
    %p169 = pneg %p168
    // Predicated region
    $region29: #{linear_projection.1} parent=5 // pred_check
      _
    $region30: #{linear_projection.1} parent=5 // pred_check_branch
      %171 = sbr.rel (%p168) target = $region32
    $region31: #{linear_projection.1} parent=5 // pred_region
      %s172 = ssub.s32 %s9, 1
      %p173 = scmp.lt.s32.totalorder %s18, 1
      %s174 = scalar_select %p173, %s18, 1
      %s175 = smul.addr %s174, 8
      %s176 = scalar_lea.vmem %s0, %s175
      %p177 = pneg %p47
      %p178 = pneg %p44
      %p179 = scmp.lt.s32.totalorder %s19, 0
      %s180 = scalar_select %p179, %s19, 0
      %s181 = smul.addr %s180, 8
      %s182 = scalar_lea.vmem %s1, %s181
      %p183 = pneg %p73
      %p184 = pneg %p70
      %p185 = scmp.lt.s32.totalorder %s19, 0
      %s186 = scalar_select %p185, %s19, 0
      %s187 = scalar_lea.vmem %s2, %s186
      %p188 = pneg %p99
      %p189 = pneg %p96
      %p190 = pneg %p127
      %p191 = pneg %p124
      %p192 = scmp.lt.s32.totalorder %s18, 1
      %s193 = scalar_select %p192, %s18, 1
      %p194 = scmp.lt.s32.totalorder %s19, 0
      %s195 = scalar_select %p194, %s19, 0
      %s196 = sadd.s32 %s195, %s193
      %s197 = smul.addr %s196, 8
      %s198 = scalar_lea.vmem %s3, %s197
      %p199 = scmp.lt.s32.totalorder %s18, 1
      %s200 = scalar_select %p199, %s18, 1
      %s201 = smul.addr %s200, 8
      %s202 = scalar_lea.vmem %s0, %s201
      %p203 = scmp.lt.s32.totalorder %s19, 0
      %s204 = scalar_select %p203, %s19, 0
      %s205 = smul.addr %s204, 8
      %s206 = scalar_lea.vmem %s1, %s205
      %p207 = scmp.lt.s32.totalorder %s19, 0
      %s208 = scalar_select %p207, %s19, 0
      %s209 = scalar_lea.vmem %s2, %s208
      %p210 = scmp.lt.s32.totalorder %s18, 1
      %s211 = scalar_select %p210, %s18, 1
      %p212 = scmp.lt.s32.totalorder %s19, 0
      %s213 = scalar_select %p212, %s19, 0
      %s214 = sadd.s32 %s213, %s211
      %s215 = smul.addr %s214, 8
      %s216 = scalar_lea.vmem %s3, %s215
      %v217 = vld [vmem:[%s202] sm:$0xff]
      %v218 = vld [vmem:[%s206] sm:$0xff]
      %v219 = vld [vmem:[%s206 + $0x8] sm:$0xff]
      %v220 = vld [vmem:[%s206 + $0x10] sm:$0xff]
      %v221 = vld [vmem:[%s206 + $0x18] sm:$0xff]
      %v222 = vld [vmem:[%s206 + $0x20] sm:$0xff]
      %v223 = vld [vmem:[%s206 + $0x28] sm:$0xff]
      %v224 = vld [vmem:[%s206 + $0x30] sm:$0xff]
      %v225 = vld [vmem:[%s206 + $0x38] sm:$0xff]
      %v226 = vld [vmem:[%s206 + $0x40] sm:$0xff]
      %v227 = vld [vmem:[%s206 + $0x48] sm:$0xff]
      %v228 = vld [vmem:[%s206 + $0x50] sm:$0xff]
      %v229 = vld [vmem:[%s206 + $0x58] sm:$0xff]
      %v230 = vld [vmem:[%s206 + $0x60] sm:$0xff]
      %v231 = vld [vmem:[%s206 + $0x68] sm:$0xff]
      %v232 = vld [vmem:[%s206 + $0x70] sm:$0xff]
      %v233 = vld [vmem:[%s206 + $0x78] sm:$0xff]
      %v234 = vld [vmem:[%s209] sm:$0x1]
      %v236 = vlaneseq
      %v237 = vshrl.u32 %v236, 7
      %v238 = vsub.s32 0, %v237
      %v239 = vrot.slane %v234, %v238
      %241 = vmatprep.subr.mxu0 0.0
      %242 = vmatpush1.msra.mxu0 %v218
      %243 = vmatprep.subr.mxu0 0.0
      %244 = vmatpush1.msra.mxu0 %v219
      %245 = vmatprep.subr.mxu0 0.0
      %246 = vmatpush1.msra.mxu0 %v220
      %247 = vmatprep.subr.mxu0 0.0
      %248 = vmatpush1.msra.mxu0 %v221
      %249 = vmatprep.subr.mxu0 0.0
      %250 = vmatpush1.msra.mxu0 %v222
      %251 = vmatprep.subr.mxu0 0.0
      %252 = vmatpush1.msra.mxu0 %v223
      %253 = vmatprep.subr.mxu0 0.0
      %254 = vmatpush1.msra.mxu0 %v224
      %255 = vmatprep.subr.mxu0 0.0
      %256 = vmatpush1.msra.mxu0 %v225
      %257 = vmatprep.subr.mxu0 0.0
      %258 = vmatpush1.msra.mxu0 %v226
      %259 = vmatprep.subr.mxu0 0.0
      %260 = vmatpush1.msra.mxu0 %v227
      %261 = vmatprep.subr.mxu0 0.0
      %262 = vmatpush1.msra.mxu0 %v228
      %263 = vmatprep.subr.mxu0 0.0
      %264 = vmatpush1.msra.mxu0 %v229
      %265 = vmatprep.subr.mxu0 0.0
      %266 = vmatpush1.msra.mxu0 %v230
      %267 = vmatprep.subr.mxu0 0.0
      %268 = vmatpush1.msra.mxu0 %v231
      %269 = vmatprep.subr.mxu0 0.0
      %270 = vmatpush1.msra.mxu0 %v232
      %271 = vmatprep.subr.mxu0 0.0
      %272 = vmatpush1.msra.mxu0 %v233
      %273 = vmatprep.subr.mxu0 0.0
      %274 = vmatpush1.msra.mxu0 0.0
      %275 = vmatprep.subr.mxu0 0.0
      %276 = vmatpush1.msra.mxu0 0.0
      %277 = vmatprep.subr.mxu0 0.0
      %278 = vmatpush1.msra.mxu0 0.0
      %279 = vmatprep.subr.mxu0 0.0
      %280 = vmatpush1.msra.mxu0 0.0
      %281 = vmatprep.subr.mxu0 0.0
      %282 = vmatpush1.msra.mxu0 0.0
      %283 = vmatprep.subr.mxu0 0.0
      %284 = vmatpush1.msra.mxu0 0.0
      %285 = vmatprep.subr.mxu0 0.0
      %286 = vmatpush1.msra.mxu0 0.0
      %287 = vmatprep.subr.mxu0 0.0
      %288 = vmatpush1.msra.mxu0 0.0
      %289 = vmatprep.subr.mxu0 0.0
      %290 = vmatpush1.msra.mxu0 0.0
      %291 = vmatprep.subr.mxu0 0.0
      %292 = vmatpush1.msra.mxu0 0.0
      %293 = vmatprep.subr.mxu0 0.0
      %294 = vmatpush1.msra.mxu0 0.0
      %295 = vmatprep.subr.mxu0 0.0
      %296 = vmatpush1.msra.mxu0 0.0
      %297 = vmatprep.subr.mxu0 0.0
      %298 = vmatpush1.msra.mxu0 0.0
      %299 = vmatprep.subr.mxu0 0.0
      %300 = vmatpush1.msra.mxu0 0.0
      %301 = vmatprep.subr.mxu0 0.0
      %302 = vmatpush1.msra.mxu0 0.0
      %303 = vmatprep.subr.mxu0 0.0
      %304 = vmatpush1.msra.mxu0 0.0
      %305 = vmatprep.mubr.f32.mxu0 0.0
      %306 = vmatmul.mubr.f32.gmra.mrb[0].mxu0 %v217
      %v307 = vpop.f32.mrb[0].mxu0
      %v308 = vadd.f32 %v239, %v307
      %v309 = vpop.f32.mrb[0].mxu0
      %310 = vdwg.mxu0
      %311 = vst [vmem:[%s216] sm:$0xff] %v308
      %p312 = scmp.lt.s32.totalorder %s18, 1
      %s313 = scalar_select %p312, %s18, 1
      %p314 = scmp.lt.s32.totalorder %s19, 0
      %s315 = scalar_select %p314, %s19, 0
      %s316 = sadd.s32 %s315, %s313
      %s317 = smul.addr %s316, 8
      %s318 = scalar_lea.vmem %s3, %s317
      // Predicated region
      $region33: #{linear_projection.1} parent=31 // pred_check
        %p319 = pneg %p124
      $region34: #{linear_projection.1} parent=31 // pred_check_branch
        %321 = sbr.rel (%p319) target = $region36
      $region35: #{linear_projection.1} parent=31 // pred_region
        _
      $region36: #{linear_projection.1} parent=31 // pred_fallthru
        _
    $region32: #{linear_projection.1} parent=5 // pred_fallthru
      _
    %p322 = scmp.le.s32.totalorder 2, %s9
    // Predicated region
    $region37: #{linear_projection.1} parent=5 // pred_check
      %p323 = pneg %p322
    $region38: #{linear_projection.1} parent=5 // pred_check_branch
      %325 = sbr.rel (%p323) target = $region40
    $region39: #{linear_projection.1} parent=5 // pred_region
      %s326 = ssub.s32 %s9, 2
      // Predicated region
      $region41: #{linear_projection.1} parent=39 // pred_check
        %p327 = pneg %p130
      $region42: #{linear_projection.1} parent=39 // pred_check_branch
        %329 = sbr.rel (%p327) target = $region44
      $region43: #{linear_projection.1} parent=39 // pred_region
        %p330 = scmp.lt.s32.totalorder %s20, 1
        %s331 = scalar_select %p330, %s20, 1
        %p332 = scmp.lt.s32.totalorder %s21, 0
        %s333 = scalar_select %p332, %s21, 0
        %s334 = sadd.s32 %s333, %s331
        %s335 = smul.addr %s334, 8
        %s336 = scalar_lea.vmem %s3, %s335
      $region44: #{linear_projection.1} parent=39 // pred_fallthru
        _
    $region40: #{linear_projection.1} parent=5 // pred_fallthru
      _
  $region6: #{linear_projection.1} parent=0 // loop_footer
    %s13 = sadd.s32 1, %s9
  $region7: #{linear_projection.1} parent=0 // loop_footer_branch
    %8 = sbr.rel target = $region3
  $region8: #{linear_projection.1} parent=0 // loop_exit
    _

</llo_original>
